<compile_context>
chip_gen: v6e
topology: v6e:2x2x1
jax: 0.10.0
libtpu: 0.0.40
codegen_flags: <defaults>
</compile_context>

<pallas_src>
import functools
import math

import jax
import jax.numpy as jnp
from jax.experimental import pallas as pl
from jax.experimental.pallas import tpu as pltpu


# ----------------------------------------------------------------------------
# Parameter setup (deterministic, mirrors the PyTorch __init__)
# ----------------------------------------------------------------------------
def make_positional_encoding_table(max_len: int, d_model: int) -> jnp.ndarray:
    """Returns pe with shape (max_len, 1, d_model), float32."""
    position = jnp.arange(max_len, dtype=jnp.float32)[:, None]            # (L, 1)
    div_term = jnp.exp(
        jnp.arange(0, d_model, 2, dtype=jnp.float32)
        * (-math.log(10000.0) / d_model)
    )                                                                      # (D/2,)
    pe = jnp.zeros((max_len, d_model), dtype=jnp.float32)
    pe = pe.at[:, 0::2].set(jnp.sin(position * div_term))
    pe = pe.at[:, 1::2].set(jnp.cos(position * div_term))
    return pe[:, None, :]                                                  # (L, 1, D)


# ----------------------------------------------------------------------------
# Pallas kernels
# ----------------------------------------------------------------------------
def _pe_add_eval_kernel(x_ref, pe_ref, o_ref):
    # x_ref: (TS, B, D) or (TS, B*D); pe_ref broadcasts against it.
    o_ref[...] = (x_ref[...] + pe_ref[...]).astype(o_ref.dtype)


def _pe_add_dropout_kernel(x_ref, pe_ref, u_ref, o_ref, *, keep_prob, inv_keep):
    y = x_ref[...] + pe_ref[...]
    keep = u_ref[...] < keep_prob                       # uniform [0,1) -> keep w.p. 1-p
    y = jnp.where(keep, y * inv_keep, jnp.zeros_like(y))  # fused inverted-dropout scale
    o_ref[...] = y.astype(o_ref.dtype)


# ----------------------------------------------------------------------------
# Wrapper
# ----------------------------------------------------------------------------
def _pick_row_tile(S: int, row_bytes: int, *, target_bytes: int = 2 * 1024 * 1024,
                   sublane_align: bool = False) -> int:
    """Pick how many sequence rows to process per grid step (~target_bytes/block)."""
    ts = max(1, min(S, target_bytes // max(1, row_bytes)))
    if sublane_align and ts < S:
        # In the 2D layout the row axis is the sublane axis -> keep it 8-aligned.
        ts = max(8, (ts // 8) * 8)
    return int(min(ts, S)) if ts <= S else int(ts)


def positional_encoding_forward(x, pe, *, p: float = 0.1, train: bool = False,
                                rng_key=None):
    """x: (S, B, D); pe: (max_len, 1, D). Returns (S, B, D)."""
    S, B, D = x.shape
    max_len = pe.shape[0]
    if S > max_len:
        raise ValueError(f"sequence length {S} exceeds max_len {max_len}")

    pe = pe.astype(x.dtype)                 # halve PE DMA traffic for bf16 inputs
    dropout_active = bool(train) and p > 0.0
    if dropout_active and p >= 1.0:         # nn.Dropout(p=1.0): everything zeroed
        return jnp.zeros_like(x)
    if dropout_active and rng_key is None:
        raise ValueError("rng_key is required when train=True and p > 0")

    itemsize = jnp.dtype(x.dtype).itemsize
    row_bytes = B * D * itemsize
    lane_dense = (D % 128 == 0)

    if lane_dense:
        # 3D layout: last dim already a multiple of 128; PE stays broadcast (TS,1,D).
        ts = _pick_row_tile(S, row_bytes)
        grid = (pl.cdiv(S, ts),)
        x_in = x
        pe_in = pe[:S]                                      # (S, 1, D)
        x_spec = pl.BlockSpec((ts, B, D), lambda i: (i, 0, 0))
        pe_spec = pl.BlockSpec((ts, 1, D), lambda i: (i, 0, 0))
        out_spec = pl.BlockSpec((ts, B, D), lambda i: (i, 0, 0))
        out_shape = jax.ShapeDtypeStruct((S, B, D), x.dtype)
        rnd_shape = (S, B, D)
    else:
        # Small / unaligned D: flatten batch into the lane axis for denser stores.
        bd = B * D
        ts = _pick_row_tile(S, row_bytes, sublane_align=True)
        grid = (pl.cdiv(S, ts),)
        x_in = x.reshape(S, bd)
        pe_in = jnp.tile(pe[:S, 0, :], (1, B))              # (S, B*D), built once
        x_spec = pl.BlockSpec((ts, bd), lambda i: (i, 0))
        pe_spec = pl.BlockSpec((ts, bd), lambda i: (i, 0))
        out_spec = pl.BlockSpec((ts, bd), lambda i: (i, 0))
        out_shape = jax.ShapeDtypeStruct((S, bd), x.dtype)
        rnd_shape = (S, bd)

    cparams = pltpu.CompilerParams(dimension_semantics=("parallel",))

    if not dropout_active:
        out = pl.pallas_call(
            _pe_add_eval_kernel,
            out_shape=out_shape,
            grid=grid,
            in_specs=[x_spec, pe_spec],
            out_specs=out_spec,
            compiler_params=cparams,
        )(x_in, pe_in)
    else:
        # TODO(synk): mask pattern uses jax.random, not torch's RNG stream
        # (distribution and 1/(1-p) scaling match nn.Dropout training semantics).
        u = jax.random.uniform(rng_key, rnd_shape, dtype=jnp.float32)
        kernel = functools.partial(
            _pe_add_dropout_kernel,
            keep_prob=float(1.0 - p),
            inv_keep=float(1.0 / (1.0 - p)),
        )
        out = pl.pallas_call(
            kernel,
            out_shape=out_shape,
            grid=grid,
            in_specs=[x_spec, pe_spec, x_spec],   # u shares x's block layout
            out_specs=out_spec,
            compiler_params=cparams,
        )(x_in, pe_in, u)

    return out if lane_dense else out.reshape(S, B, D)


# ----------------------------------------------------------------------------
# Demo / correctness check
# ----------------------------------------------------------------------------
if __name__ == "__main__":
    MAX_LEN = 64          # small max_len for the demo (module default is 5000)
    P = 0.1

    key = jax.random.PRNGKey(0)
    k_small, k_big, k_drop = jax.random.split(key, 3)

    # Case 1: small / non-128-aligned d_model -> lane-packed 2D path.
    S, B, D = 8, 2, 32
    x = jax.random.normal(k_small, (S, B, D), dtype=jnp.float32)
    pe = make_positional_encoding_table(MAX_LEN, D)

    out = jax.block_until_ready(positional_encoding_forward(x, pe, p=P, train=False))
    ref = x + pe[:S].astype(x.dtype)
    assert out.shape == (S, B, D)
    assert jnp.allclose(out, ref, atol=1e-6, rtol=1e-6)

    out_tr = jax.block_until_ready(
        positional_encoding_forward(x, pe, p=P, train=True, rng_key=k_drop))
    scaled = ref / (1.0 - P)
    ok = jnp.logical_or(jnp.isclose(out_tr, 0.0),
                        jnp.isclose(out_tr, scaled, atol=1e-5, rtol=1e-5))
    assert bool(jnp.all(ok))

    # Case 2: 128-aligned d_model -> lane-dense 3D path with broadcast PE block.
    S2, B2, D2 = 8, 2, 128
    x2 = jax.random.normal(k_big, (S2, B2, D2), dtype=jnp.float32)
    pe2 = make_positional_encoding_table(MAX_LEN, D2)

    out2 = jax.block_until_ready(positional_encoding_forward(x2, pe2, p=P, train=False))
    ref2 = x2 + pe2[:S2].astype(x2.dtype)
    assert out2.shape == (S2, B2, D2)
    assert jnp.allclose(out2, ref2, atol=1e-6, rtol=1e-6)

    out2_tr = jax.block_until_ready(
        positional_encoding_forward(x2, pe2, p=P, train=True, rng_key=k_drop))
    assert out2_tr.shape == (S2, B2, D2)

    print("KERNEL_OK")
</pallas_src>

<mosaic_0001>
module attributes {stable_mosaic.version = 11 : i64} {
  func.func @_pe_add_eval_kernel(%arg0: i32, %arg1: memref<8x64xf32, #tpu.memory_space<vmem>>, %arg2: memref<8x64xf32, #tpu.memory_space<vmem>>, %arg3: memref<8x64xf32, #tpu.memory_space<vmem>>) attributes {dimension_semantics = [#tpu.dimension_semantics<parallel>], iteration_bounds = array<i64: 1>, scalar_prefetch = 0 : i64, scratch_operands = 0 : i64, tpu.core_type = #tpu.core_type<tc>, window_params = [{transform_indices = @transform_0, window_bounds = array<i64: 8, 64>}, {transform_indices = @transform_1, window_bounds = array<i64: 8, 64>}, {transform_indices = @transform_2, window_bounds = array<i64: 8, 64>}]} {
    %c0 = arith.constant 0 : index
    %c0_0 = arith.constant 0 : index
    %0 = vector.load %arg1[%c0, %c0_0] : memref<8x64xf32, #tpu.memory_space<vmem>>, vector<8x64xf32>
    %c0_1 = arith.constant 0 : index
    %c0_2 = arith.constant 0 : index
    %1 = vector.load %arg2[%c0_1, %c0_2] : memref<8x64xf32, #tpu.memory_space<vmem>>, vector<8x64xf32>
    %2 = arith.addf %0, %1 : vector<8x64xf32>
    %c0_3 = arith.constant 0 : index
    %c0_4 = arith.constant 0 : index
    %3 = vector.load %arg3[%c0_3, %c0_4] : memref<8x64xf32, #tpu.memory_space<vmem>>, vector<8x64xf32>
    tpu.vector_store %arg3[%c0_3, %c0_4], %2 {strides = array<i32>} : memref<8x64xf32, #tpu.memory_space<vmem>>, vector<8x64xf32>,
    return
  }
  func.func @transform_0(%arg0: i32) -> (i32, i32) {
    %c0_i32 = arith.constant 0 : i32
    %c0_i32_0 = arith.constant 0 : i32
    return %arg0, %c0_i32 : i32, i32
  }
  func.func @transform_1(%arg0: i32) -> (i32, i32) {
    %c0_i32 = arith.constant 0 : i32
    %c0_i32_0 = arith.constant 0 : i32
    return %arg0, %c0_i32 : i32, i32
  }
  func.func @transform_2(%arg0: i32) -> (i32, i32) {
    %c0_i32 = arith.constant 0 : i32
    %c0_i32_0 = arith.constant 0 : i32
    return %arg0, %c0_i32 : i32, i32
  }
}

</mosaic_0001>

<llo_original>
// kernel: tpu_custom_call.1
$region0: #{tpu_custom_call.1}
  #allocation0 [shape = 'u32[]', space=smem, size = 0x4, offset = 0x4, fixed_abs, tag = 'smem constant byte address 0x4 - core index']
  #allocation1 [shape = 'u32[144,128]{1,0:T(1,128)}', space=vmem, size = 0x12000, scoped, tag = 'internal scratch']
  %s0 = inlined_call_operand.hbm [shape: f32[8,64], index: 0, kind: input, shape index: {}]
  %s1 = inlined_call_operand.hbm [shape: f32[8,64], index: 1, kind: input, shape index: {}]
  %s2 = inlined_call_operand.hbm [shape: f32[8,64], index: 2, kind: output, shape index: {}]
  %s3 = sld [smem:[#allocation0]]
  $region26: #{tpu_custom_call.1} parent=0
    _
  %s5 = ssub.s32 1, %s3
  %s6 = scalar_select 0, %s5, %s3
  $region1: #{tpu_custom_call.1} parent=0
    #allocation2 [shape = 'u8[4096]{0}', space=vmem, size = 0x1000, scoped, tag = 'input window, operand 0, single buffered']
    #allocation3 [shape = 's32[1]{0}', space=sflag, size = 0x4, scoped, tag = 'scoped memory for tpu_custom_call.1']
    #allocation4 [shape = 's32[1]{0}', space=sflag, size = 0x4, scoped, tag = 'scoped memory for tpu_custom_call.1']
    #allocation5 [shape = 'u8[4096]{0}', space=vmem, size = 0x1000, scoped, tag = 'input window, operand 1, single buffered']
    #allocation6 [shape = 's32[1]{0}', space=sflag, size = 0x4, scoped, tag = 'scoped memory for tpu_custom_call.1']
    #allocation7 [shape = 'u8[4096]{0}', space=vmem, size = 0x1000, scoped, tag = 'output window, operand 0, single buffered']
    %7 = vsyncpa [#allocation3], 0
    %8 = vsyncpa [#allocation6], 0
    %9 = vsyncpa [#allocation4], 0
    // Predicated region
    $region2: #{tpu_custom_call.1} parent=1 // pred_check
      _
    $region3: #{tpu_custom_call.1} parent=1 // pred_check_branch
      %11 = sbr.rel (0) target = $region5
    $region4: #{tpu_custom_call.1} parent=1 // pred_region
      %s13 = ssub.s32 128, 128
      %14 = vsyncadd [#allocation3], %s13
      %s16 = sshll.u32 [#allocation2], 4
      %s17 = int_to_ptr.vmem [resolvable:$true] %s16
      %19 = dma.hbm_to_vmem [thread:$0]  %s0, 128, %s17, [#allocation3]
    $region5: #{tpu_custom_call.1} parent=1 // pred_fallthru
      _
    // Predicated region
    $region6: #{tpu_custom_call.1} parent=1 // pred_check
      _
    $region7: #{tpu_custom_call.1} parent=1 // pred_check_branch
      %21 = sbr.rel (0) target = $region9
    $region8: #{tpu_custom_call.1} parent=1 // pred_region
      %s23 = ssub.s32 128, 128
      %24 = vsyncadd [#allocation6], %s23
      %s26 = sshll.u32 [#allocation5], 4
      %s27 = int_to_ptr.vmem [resolvable:$true] %s26
      %29 = dma.hbm_to_vmem [thread:$0]  %s1, 128, %s27, [#allocation6]
    $region9: #{tpu_custom_call.1} parent=1 // pred_fallthru
      _
    // Predicated region
    $region10: #{tpu_custom_call.1} parent=1 // pred_check
      _
    $region11: #{tpu_custom_call.1} parent=1 // pred_check_branch
      %31 = sbr.rel (0) target = $region13
    $region12: #{tpu_custom_call.1} parent=1 // pred_region
      %32 = dma.done [#allocation3], 128
    $region13: #{tpu_custom_call.1} parent=1 // pred_fallthru
      _
    // Predicated region
    $region14: #{tpu_custom_call.1} parent=1 // pred_check
      _
    $region15: #{tpu_custom_call.1} parent=1 // pred_check_branch
      %34 = sbr.rel (0) target = $region17
    $region16: #{tpu_custom_call.1} parent=1 // pred_region
      %35 = dma.done [#allocation6], 128
    $region17: #{tpu_custom_call.1} parent=1 // pred_fallthru
      _
    %v36 = vld [vmem:[#allocation2] sm:$0xff]
    %v37 = vld [vmem:[#allocation5] sm:$0xff]
    %v38 = vadd.f32 %v36, %v37
    %vm39 = vcmask 523264
    %40 = vst.msk [vmem:[#allocation7] sm:$0xff] %vm39, %v38
    // Predicated region
    $region18: #{tpu_custom_call.1} parent=1 // pred_check
      _
    $region19: #{tpu_custom_call.1} parent=1 // pred_check_branch
      %42 = sbr.rel (0) target = $region21
    $region20: #{tpu_custom_call.1} parent=1 // pred_region
      %s44 = ssub.s32 128, 128
      %45 = vsyncadd [#allocation4], %s44
      %s47 = sshll.u32 [#allocation7], 4
      %s48 = int_to_ptr.vmem [resolvable:$true] %s47
      %50 = dma.vmem_to_hbm [thread:$0]  %s48, 128, %s2, [#allocation4]
    $region21: #{tpu_custom_call.1} parent=1 // pred_fallthru
      _
    // Predicated region
    $region22: #{tpu_custom_call.1} parent=1 // pred_check
      _
    $region23: #{tpu_custom_call.1} parent=1 // pred_check_branch
      %52 = sbr.rel (0) target = $region25
    $region24: #{tpu_custom_call.1} parent=1 // pred_region
      %53 = dma.done [#allocation4], 128
    $region25: #{tpu_custom_call.1} parent=1 // pred_fallthru
      _
    %54 = vsyncpa [#allocation3], 1
    %55 = vsyncpa [#allocation6], 1
    %56 = vsyncpa [#allocation4], 1

</llo_original>
